<compile_context>
chip_gen: v7x
topology: tpu7x:2x2x1
jax: 0.10.0
libtpu: 0.0.40
codegen_flags: <defaults>
</compile_context>

<pallas_src>
import jax
import jax.numpy as jnp
from jax.experimental import pallas as pl
from jax.experimental.pallas import tpu as pltpu


PAD_DIM = 128      # lane width; in_dim / hidden zero-padded to this
OUT_DIM = 128      # real output feature width (already lane-dense)
BM = 128           # batch tile (rows per grid step)

# Packed parameter slab layout (rows of a (392, 128) f32 array):
#   [  0:128)  W1 (padded in->hid)      [128:256)  W2 (padded hid->out)
#   [256:384)  W3 (out->out)            row 384 b1, row 385 b2, row 386 b3
#   [387:392)  zero pad (row count kept a multiple of 8)
_PROWS = 392


# ----------------------------------------------------------------------------
# Fused Pallas kernel: both nodes + PenaltyLoss, batch-tiled grid
# ----------------------------------------------------------------------------
def _problem_kernel(scal_ref,             # SMEM (4,)  [w_obj, w_con, ub, inv_count]
                    x_ref,                # VMEM (BM, 128)  padded input block
                    p_ref,                # VMEM (392, 128) packed weight/bias slab
                    ref_ref,              # VMEM (BM, 128)  regression target block
                    y_ref, z_ref,         # VMEM outputs (BM, 128)
                    stats_ref,            # SMEM output (3,)  [obj, con, loss]
                    obj_acc, con_acc):    # VMEM scratch (1, 128) partial sums
    i = pl.program_id(0)
    last = pl.num_programs(0) - 1

    @pl.when(i == 0)
    def _():
        obj_acc[...] = jnp.zeros_like(obj_acc)
        con_acc[...] = jnp.zeros_like(con_acc)

    # --- node "policy": y = relu(x @ W1 + b1) @ W2 + b2  (clean 128x128 MXU passes)
    x = x_ref[...]
    h = jnp.dot(x, p_ref[0:128, :], preferred_element_type=jnp.float32)
    h = jnp.maximum(h + p_ref[384:385, :], 0.0)
    y = jnp.dot(h, p_ref[128:256, :],
                preferred_element_type=jnp.float32) + p_ref[385:386, :]

    # --- node "dynamics": z = tanh(y @ W3 + b3)
    z = jnp.tanh(jnp.dot(y, p_ref[256:384, :],
                         preferred_element_type=jnp.float32) + p_ref[386:387, :])

    # node outputs (lane-dense, unmasked stores)
    y_ref[...] = y.astype(y_ref.dtype)
    z_ref[...] = z.astype(z_ref.dtype)

    # --- PenaltyLoss partial sums: vectorized per-lane, accumulated over blocks
    # TODO(synk): per-element ub bounds would need a VMEM input block; this
    # kernel assumes the bound is a uniform scalar (kept in SMEM).
    diff = z - ref_ref[...]
    viol = jnp.maximum(y - scal_ref[2], 0.0)
    obj_acc[...] += jnp.sum(diff * diff, axis=0, keepdims=True)
    con_acc[...] += jnp.sum(viol * viol, axis=0, keepdims=True)

    # --- finalize weighted means into the SMEM scalar output on the last step
    @pl.when(i == last)
    def _():
        inv = scal_ref[3]
        obj = scal_ref[0] * jnp.sum(obj_acc[...]) * inv
        con = scal_ref[1] * jnp.sum(con_acc[...]) * inv
        stats_ref[0] = obj
        stats_ref[1] = con
        stats_ref[2] = obj + con


def fused_problem(x_pad, pmat, refs, scal):
    """Single pallas_call computing y, z and the packed [obj, con, loss]."""
    batch = x_pad.shape[0]
    assert batch % BM == 0, "demo wrapper requires batch to be a multiple of 128"
    nblk = batch // BM

    flops = 2 * batch * OUT_DIM * (3 * PAD_DIM) + 12 * batch * OUT_DIM
    bytes_accessed = 4 * (x_pad.size + pmat.size + refs.size + 2 * batch * OUT_DIM + 8)

    return pl.pallas_call(
        _problem_kernel,
        out_shape=(
            jax.ShapeDtypeStruct((batch, OUT_DIM), jnp.float32),   # y
            jax.ShapeDtypeStruct((batch, OUT_DIM), jnp.float32),   # z
            jax.ShapeDtypeStruct((3,), jnp.float32),               # [obj, con, loss]
        ),
        grid_spec=pltpu.PrefetchScalarGridSpec(
            num_scalar_prefetch=0,
            grid=(nblk,),
            in_specs=[
                pl.BlockSpec(memory_space=pltpu.MemorySpace.SMEM),     # scalars
                pl.BlockSpec((BM, PAD_DIM), lambda i: (i, 0)),         # x block
                pl.BlockSpec((_PROWS, PAD_DIM), lambda i: (0, 0)),     # weights (resident)
                pl.BlockSpec((BM, OUT_DIM), lambda i: (i, 0)),         # ref block
            ],
            out_specs=(
                pl.BlockSpec((BM, OUT_DIM), lambda i: (i, 0)),         # y
                pl.BlockSpec((BM, OUT_DIM), lambda i: (i, 0)),         # z
                pl.BlockSpec(memory_space=pltpu.MemorySpace.SMEM),     # stats
            ),
            scratch_shapes=[pltpu.VMEM((1, OUT_DIM), jnp.float32),
                            pltpu.VMEM((1, OUT_DIM), jnp.float32)],
        ),
        # The single grid axis carries the loss reduction -> "arbitrary".
        # TODO(synk): to use v7x's second TensorCore, emit per-block partial
        # stats and reduce in the wrapper so this axis can be "parallel".
        compiler_params=pltpu.CompilerParams(
            dimension_semantics=("arbitrary",)),
        cost_estimate=pl.CostEstimate(flops=flops,
                                      transcendentals=batch * OUT_DIM,
                                      bytes_accessed=bytes_accessed),
    )(scal, x_pad, pmat, refs)


# ----------------------------------------------------------------------------
# One-time parameter padding + packing (done at init, not per call)
# ----------------------------------------------------------------------------
def pack_params(p):
    in_dim, hid = p["W1"].shape
    assert p["W3"].shape[1] == OUT_DIM
    W1 = jnp.zeros((PAD_DIM, PAD_DIM), jnp.float32).at[:in_dim, :hid].set(p["W1"])
    W2 = jnp.zeros((PAD_DIM, OUT_DIM), jnp.float32).at[:hid, :].set(p["W2"])
    W3 = p["W3"].astype(jnp.float32)
    b1 = jnp.zeros((1, PAD_DIM), jnp.float32).at[:, :hid].set(p["b1"])
    b2 = p["b2"].reshape(1, OUT_DIM).astype(jnp.float32)
    b3 = p["b3"].reshape(1, OUT_DIM).astype(jnp.float32)
    pad = jnp.zeros((_PROWS - 387, OUT_DIM), jnp.float32)
    return jnp.concatenate([W1, W2, W3, b1, b2, b3, pad], axis=0)


# ----------------------------------------------------------------------------
# Problem: nodes + loss + dict plumbing (glue stays in Python; compute is one
# jitted XLA program containing the single fused Pallas kernel)
# ----------------------------------------------------------------------------
class PallasProblem:
    """Mirrors neuromancer.problem.Problem.forward / .step semantics."""

    def __init__(self, params):
        self.params = params
        self.pmat = pack_params(params)                 # padded + packed once
        self._forward_jit = jax.jit(self._forward_impl)

    @staticmethod
    def _forward_impl(x, pmat, refs, loss_weights, ub):
        batch, in_dim = x.shape
        # pad the narrow input feature dim to a full 128-lane tile (per call)
        x_pad = jnp.zeros((batch, PAD_DIM), jnp.float32).at[:, :in_dim].set(x)
        inv_count = jnp.float32(1.0 / (batch * OUT_DIM))
        scal = jnp.stack([loss_weights[0].astype(jnp.float32),
                          loss_weights[1].astype(jnp.float32),
                          jnp.asarray(ub, jnp.float32),
                          inv_count])
        y, z, stats = fused_problem(x_pad, pmat, refs, scal)
        obj, con, loss = stats[0], stats[1], stats[2]
        # aggregated data dict (step outputs) merged with loss-term dict
        return {"x": x, "y": y, "z": z,
                "obj": obj, "con": con,
                "objective_loss": obj, "penalty_loss": con,
                "loss": loss}

    def forward(self, data):
        out = self._forward_jit(data["x"], self.pmat, self.params["ref"],
                                self.params["loss_weights"], self.params["ub"])
        prefix = data["name"]
        return {f"{prefix}_{k}": v for k, v in out.items()}


# ----------------------------------------------------------------------------
# Pure-JAX reference (for correctness check)
# ----------------------------------------------------------------------------
def reference_forward(data, p):
    x = data["x"]
    h = jnp.maximum(x @ p["W1"] + p["b1"], 0.0)
    y = h @ p["W2"] + p["b2"]
    z = jnp.tanh(y @ p["W3"] + p["b3"])
    obj = p["loss_weights"][0] * jnp.mean((z - p["ref"]) ** 2)
    con = p["loss_weights"][1] * jnp.mean(jnp.maximum(y - p["ub"], 0.0) ** 2)
    return {"y": y, "z": z, "obj": obj, "con": con, "loss": obj + con}


if __name__ == "__main__":
    # batch = 256 (two 128-row grid tiles), narrow in/hidden dims padded in-wrapper.
    batch, in_dim, hidden, out_dim = 256, 16, 32, 128

    key = jax.random.PRNGKey(0)
    ks = jax.random.split(key, 8)
    params = {
        "W1": jax.random.normal(ks[0], (in_dim, hidden), jnp.float32) * 0.2,
        "b1": jax.random.normal(ks[1], (1, hidden), jnp.float32) * 0.1,
        "W2": jax.random.normal(ks[2], (hidden, out_dim), jnp.float32) * 0.2,
        "b2": jax.random.normal(ks[3], (1, out_dim), jnp.float32) * 0.1,
        "W3": jax.random.normal(ks[4], (out_dim, out_dim), jnp.float32) * 0.1,
        "b3": jax.random.normal(ks[5], (1, out_dim), jnp.float32) * 0.1,
        "ref": jax.random.normal(ks[6], (batch, out_dim), jnp.float32) * 0.5,
        "ub": jnp.float32(0.25),                              # uniform scalar bound
        "loss_weights": jnp.array([1.0, 10.0], jnp.float32),  # [w_obj, w_con]
    }

    x = jax.random.normal(ks[7], (batch, in_dim), jnp.float32)
    data = {"x": x, "name": "train"}

    problem = PallasProblem(params)
    out = problem.forward(data)
    out = jax.tree_util.tree_map(jax.block_until_ready, out)

    ref = reference_forward(data, params)
    assert jnp.allclose(out["train_y"], ref["y"], atol=1e-4, rtol=1e-4)
    assert jnp.allclose(out["train_z"], ref["z"], atol=1e-4, rtol=1e-4)
    assert jnp.allclose(out["train_obj"], ref["obj"], atol=1e-4, rtol=1e-4)
    assert jnp.allclose(out["train_con"], ref["con"], atol=1e-4, rtol=1e-4)
    assert jnp.allclose(out["train_loss"], ref["loss"], atol=1e-4, rtol=1e-4)
    expected_keys = {"train_x", "train_y", "train_z", "train_obj", "train_con",
                     "train_objective_loss", "train_penalty_loss", "train_loss"}
    assert expected_keys == set(out.keys())

    # TODO(synk): pydot graph construction / .show() visualization has no
    # Pallas equivalent (host-side plotting only) and is omitted.
    print("KERNEL_OK")
</pallas_src>

<mosaic_0001>
module attributes {stable_mosaic.version = 11 : i64} {
  func.func @_problem_kernel(%arg0: i32, %arg1: memref<4xf32, #tpu.memory_space<smem>>, %arg2: memref<128x128xf32, #tpu.memory_space<vmem>>, %arg3: memref<392x128xf32, #tpu.memory_space<vmem>>, %arg4: memref<128x128xf32, #tpu.memory_space<vmem>>, %arg5: memref<128x128xf32, #tpu.memory_space<vmem>>, %arg6: memref<128x128xf32, #tpu.memory_space<vmem>>, %arg7: memref<3xf32, #tpu.memory_space<smem>>, %arg8: memref<1x128xf32, #tpu.memory_space<vmem>>, %arg9: memref<1x128xf32, #tpu.memory_space<vmem>>) attributes {dimension_semantics = [#tpu.dimension_semantics<arbitrary>], iteration_bounds = array<i64: 2>, scalar_prefetch = 0 : i64, scratch_operands = 2 : i64, tpu.core_type = #tpu.core_type<tc>, window_params = [{transform_indices = @transform_0, window_bounds = array<i64: 4>}, {transform_indices = @transform_1, window_bounds = array<i64: 128, 128>}, {pipeline_mode = #tpu.pipeline_mode<synchronous>, transform_indices = @transform_2, window_bounds = array<i64: 392, 128>}, {transform_indices = @transform_3, window_bounds = array<i64: 128, 128>}, {transform_indices = @transform_4, window_bounds = array<i64: 128, 128>}, {transform_indices = @transform_5, window_bounds = array<i64: 128, 128>}, {transform_indices = @transform_6, window_bounds = array<i64: 3>}]} {
    %c0_i32 = arith.constant 0 : i32
    %0 = arith.cmpi eq, %arg0, %c0_i32 : i32
    %1 = arith.extui %0 : i1 to i32
    %c0_i32_0 = arith.constant 0 : i32
    %2 = arith.cmpi ne, %1, %c0_i32_0 : i32
    scf.if %2 {
      %cst_30 = arith.constant 0.000000e+00 : f32
      %46 = vector.broadcast %cst_30 : f32 to vector<1x128xf32>
      %c0_31 = arith.constant 0 : index
      %c0_32 = arith.constant 0 : index
      %47 = vector.load %arg8[%c0_31, %c0_32] : memref<1x128xf32, #tpu.memory_space<vmem>>, vector<1x128xf32>
      tpu.vector_store %arg8[%c0_31, %c0_32], %46 {strides = array<i32>} : memref<1x128xf32, #tpu.memory_space<vmem>>, vector<1x128xf32>,
      %cst_33 = arith.constant 0.000000e+00 : f32
      %48 = vector.broadcast %cst_33 : f32 to vector<1x128xf32>
      %c0_34 = arith.constant 0 : index
      %c0_35 = arith.constant 0 : index
      %49 = vector.load %arg9[%c0_34, %c0_35] : memref<1x128xf32, #tpu.memory_space<vmem>>, vector<1x128xf32>
      tpu.vector_store %arg9[%c0_34, %c0_35], %48 {strides = array<i32>} : memref<1x128xf32, #tpu.memory_space<vmem>>, vector<1x128xf32>,
    } else {
    }
    %c0 = arith.constant 0 : index
    %c0_1 = arith.constant 0 : index
    %3 = vector.load %arg2[%c0, %c0_1] : memref<128x128xf32, #tpu.memory_space<vmem>>, vector<128x128xf32>
    %c0_2 = arith.constant 0 : index
    %c0_3 = arith.constant 0 : index
    %4 = vector.load %arg3[%c0_2, %c0_3] : memref<392x128xf32, #tpu.memory_space<vmem>>, vector<128x128xf32>
    %cst = arith.constant dense<0.000000e+00> : vector<128x128xf32>
    %5 = tpu.matmul %3, %4, %cst {dimension_numbers = #tpu.dot_dimension_numbers<[1], [0], [0], [1], [0, 0, 1, 1], [], []>} : vector<128x128xf32>, vector<128x128xf32>, vector<128x128xf32> -> vector<128x128xf32>
    %c384 = arith.constant 384 : index
    %c0_4 = arith.constant 0 : index
    %6 = vector.load %arg3[%c384, %c0_4] : memref<392x128xf32, #tpu.memory_space<vmem>>, vector<1x128xf32>
    %7 = vector.broadcast %6 : vector<1x128xf32> to vector<128x128xf32>
    %8 = arith.addf %5, %7 : vector<128x128xf32>
    %cst_5 = arith.constant 0.000000e+00 : f32
    %9 = vector.broadcast %cst_5 : f32 to vector<128x128xf32>
    %10 = arith.maximumf %8, %9 : vector<128x128xf32>
    %c128 = arith.constant 128 : index
    %c0_6 = arith.constant 0 : index
    %11 = vector.load %arg3[%c128, %c0_6] : memref<392x128xf32, #tpu.memory_space<vmem>>, vector<128x128xf32>
    %cst_7 = arith.constant dense<0.000000e+00> : vector<128x128xf32>
    %12 = tpu.matmul %10, %11, %cst_7 {dimension_numbers = #tpu.dot_dimension_numbers<[1], [0], [0], [1], [0, 0, 1, 1], [], []>} : vector<128x128xf32>, vector<128x128xf32>, vector<128x128xf32> -> vector<128x128xf32>
    %c385 = arith.constant 385 : index
    %c0_8 = arith.constant 0 : index
    %13 = vector.load %arg3[%c385, %c0_8] : memref<392x128xf32, #tpu.memory_space<vmem>>, vector<1x128xf32>
    %14 = vector.broadcast %13 : vector<1x128xf32> to vector<128x128xf32>
    %15 = arith.addf %12, %14 : vector<128x128xf32>
    %c256 = arith.constant 256 : index
    %c0_9 = arith.constant 0 : index
    %16 = vector.load %arg3[%c256, %c0_9] : memref<392x128xf32, #tpu.memory_space<vmem>>, vector<128x128xf32>
    %cst_10 = arith.constant dense<0.000000e+00> : vector<128x128xf32>
    %17 = tpu.matmul %15, %16, %cst_10 {dimension_numbers = #tpu.dot_dimension_numbers<[1], [0], [0], [1], [0, 0, 1, 1], [], []>} : vector<128x128xf32>, vector<128x128xf32>, vector<128x128xf32> -> vector<128x128xf32>
    %c386 = arith.constant 386 : index
    %c0_11 = arith.constant 0 : index
    %18 = vector.load %arg3[%c386, %c0_11] : memref<392x128xf32, #tpu.memory_space<vmem>>, vector<1x128xf32>
    %19 = vector.broadcast %18 : vector<1x128xf32> to vector<128x128xf32>
    %20 = arith.addf %17, %19 : vector<128x128xf32>
    %21 = math.tanh %20 : vector<128x128xf32>
    %c0_12 = arith.constant 0 : index
    %c0_13 = arith.constant 0 : index
    %22 = vector.load %arg5[%c0_12, %c0_13] : memref<128x128xf32, #tpu.memory_space<vmem>>, vector<128x128xf32>
    tpu.vector_store %arg5[%c0_12, %c0_13], %15 {strides = array<i32>} : memref<128x128xf32, #tpu.memory_space<vmem>>, vector<128x128xf32>,
    %c0_14 = arith.constant 0 : index
    %c0_15 = arith.constant 0 : index
    %23 = vector.load %arg6[%c0_14, %c0_15] : memref<128x128xf32, #tpu.memory_space<vmem>>, vector<128x128xf32>
    tpu.vector_store %arg6[%c0_14, %c0_15], %21 {strides = array<i32>} : memref<128x128xf32, #tpu.memory_space<vmem>>, vector<128x128xf32>,
    %c0_16 = arith.constant 0 : index
    %c0_17 = arith.constant 0 : index
    %24 = vector.load %arg4[%c0_16, %c0_17] : memref<128x128xf32, #tpu.memory_space<vmem>>, vector<128x128xf32>
    %25 = arith.subf %21, %24 : vector<128x128xf32>
    %c2 = arith.constant 2 : index
    %26 = memref.load %arg1[%c2] : memref<4xf32, #tpu.memory_space<smem>>
    %27 = vector.broadcast %26 : f32 to vector<128x128xf32>
    %28 = arith.subf %15, %27 : vector<128x128xf32>
    %cst_18 = arith.constant 0.000000e+00 : f32
    %29 = vector.broadcast %cst_18 : f32 to vector<128x128xf32>
    %30 = arith.maximumf %28, %29 : vector<128x128xf32>
    %c0_19 = arith.constant 0 : index
    %c0_20 = arith.constant 0 : index
    %31 = vector.load %arg8[%c0_19, %c0_20] : memref<1x128xf32, #tpu.memory_space<vmem>>, vector<1x128xf32>
    %32 = arith.mulf %25, %25 : vector<128x128xf32>
    %cst_21 = arith.constant dense<0.000000e+00> : vector<128xf32>
    %33 = vector.multi_reduction <add>, %32, %cst_21 [0] : vector<128x128xf32> to vector<128xf32>
    %34 = vector.shape_cast %33 : vector<128xf32> to vector<1x128xf32>
    %35 = arith.addf %31, %34 : vector<1x128xf32>
    %c0_22 = arith.constant 0 : index
    %c0_23 = arith.constant 0 : index
    %36 = vector.load %arg8[%c0_22, %c0_23] : memref<1x128xf32, #tpu.memory_space<vmem>>, vector<1x128xf32>
    tpu.vector_store %arg8[%c0_22, %c0_23], %35 {strides = array<i32>} : memref<1x128xf32, #tpu.memory_space<vmem>>, vector<1x128xf32>,
    %c0_24 = arith.constant 0 : index
    %c0_25 = arith.constant 0 : index
    %37 = vector.load %arg9[%c0_24, %c0_25] : memref<1x128xf32, #tpu.memory_space<vmem>>, vector<1x128xf32>
    %38 = arith.mulf %30, %30 : vector<128x128xf32>
    %cst_26 = arith.constant dense<0.000000e+00> : vector<128xf32>
    %39 = vector.multi_reduction <add>, %38, %cst_26 [0] : vector<128x128xf32> to vector<128xf32>
    %40 = vector.shape_cast %39 : vector<128xf32> to vector<1x128xf32>
    %41 = arith.addf %37, %40 : vector<1x128xf32>
    %c0_27 = arith.constant 0 : index
    %c0_28 = arith.constant 0 : index
    %42 = vector.load %arg9[%c0_27, %c0_28] : memref<1x128xf32, #tpu.memory_space<vmem>>, vector<1x128xf32>
    tpu.vector_store %arg9[%c0_27, %c0_28], %41 {strides = array<i32>} : memref<1x128xf32, #tpu.memory_space<vmem>>, vector<1x128xf32>,
    %c1_i32 = arith.constant 1 : i32
    %43 = arith.cmpi eq, %arg0, %c1_i32 : i32
    %44 = arith.extui %43 : i1 to i32
    %c0_i32_29 = arith.constant 0 : i32
    %45 = arith.cmpi ne, %44, %c0_i32_29 : i32
    scf.if %45 {
      %c3 = arith.constant 3 : index
      %46 = memref.load %arg1[%c3] : memref<4xf32, #tpu.memory_space<smem>>
      %c0_30 = arith.constant 0 : index
      %47 = memref.load %arg1[%c0_30] : memref<4xf32, #tpu.memory_space<smem>>
      %c0_31 = arith.constant 0 : index
      %c0_32 = arith.constant 0 : index
      %48 = vector.load %arg8[%c0_31, %c0_32] : memref<1x128xf32, #tpu.memory_space<vmem>>, vector<1x128xf32>
      %49 = vector.shape_cast %48 : vector<1x128xf32> to vector<1x1x128xf32>
      %cst_33 = arith.constant dense<0.000000e+00> : vector<1xf32>
      %50 = vector.multi_reduction <add>, %49, %cst_33 [1, 2] : vector<1x1x128xf32> to vector<1xf32>
      %51 = vector.shape_cast %50 : vector<1xf32> to vector<1x1x1xf32>
      %52 = vector.extract %51[0, 0, 0] : f32 from vector<1x1x1xf32>
      %53 = arith.mulf %47, %52 : f32
      %54 = arith.mulf %53, %46 : f32
      %c1 = arith.constant 1 : index
      %55 = memref.load %arg1[%c1] : memref<4xf32, #tpu.memory_space<smem>>
      %c0_34 = arith.constant 0 : index
      %c0_35 = arith.constant 0 : index
      %56 = vector.load %arg9[%c0_34, %c0_35] : memref<1x128xf32, #tpu.memory_space<vmem>>, vector<1x128xf32>
      %57 = vector.shape_cast %56 : vector<1x128xf32> to vector<1x1x128xf32>
      %cst_36 = arith.constant dense<0.000000e+00> : vector<1xf32>
      %58 = vector.multi_reduction <add>, %57, %cst_36 [1, 2] : vector<1x1x128xf32> to vector<1xf32>
      %59 = vector.shape_cast %58 : vector<1xf32> to vector<1x1x1xf32>
      %60 = vector.extract %59[0, 0, 0] : f32 from vector<1x1x1xf32>
      %61 = arith.mulf %55, %60 : f32
      %62 = arith.mulf %61, %46 : f32
      %c0_37 = arith.constant 0 : index
      %63 = memref.load %arg7[%c0_37] : memref<3xf32, #tpu.memory_space<smem>>
      memref.store %54, %arg7[%c0_37] : memref<3xf32, #tpu.memory_space<smem>>
      %c1_38 = arith.constant 1 : index
      %64 = memref.load %arg7[%c1_38] : memref<3xf32, #tpu.memory_space<smem>>
      memref.store %62, %arg7[%c1_38] : memref<3xf32, #tpu.memory_space<smem>>
      %65 = arith.addf %54, %62 : f32
      %c2_39 = arith.constant 2 : index
      %66 = memref.load %arg7[%c2_39] : memref<3xf32, #tpu.memory_space<smem>>
      memref.store %65, %arg7[%c2_39] : memref<3xf32, #tpu.memory_space<smem>>
    } else {
    }
    return
  }
  func.func @transform_0(%arg0: i32) -> i32 {
    %c0_i32 = arith.constant 0 : i32
    %c0_i32_0 = arith.constant 0 : i32
    return %c0_i32 : i32
  }
  func.func @transform_1(%arg0: i32) -> (i32, i32) {
    %c0_i32 = arith.constant 0 : i32
    %c0_i32_0 = arith.constant 0 : i32
    return %arg0, %c0_i32 : i32, i32
  }
  func.func @transform_2(%arg0: i32) -> (i32, i32) {
    %c0_i32 = arith.constant 0 : i32
    %c0_i32_0 = arith.constant 0 : i32
    %c0_i32_1 = arith.constant 0 : i32
    return %c0_i32, %c0_i32_0 : i32, i32
  }
  func.func @transform_3(%arg0: i32) -> (i32, i32) {
    %c0_i32 = arith.constant 0 : i32
    %c0_i32_0 = arith.constant 0 : i32
    return %arg0, %c0_i32 : i32, i32
  }
  func.func @transform_4(%arg0: i32) -> (i32, i32) {
    %c0_i32 = arith.constant 0 : i32
    %c0_i32_0 = arith.constant 0 : i32
    return %arg0, %c0_i32 : i32, i32
  }
  func.func @transform_5(%arg0: i32) -> (i32, i32) {
    %c0_i32 = arith.constant 0 : i32
    %c0_i32_0 = arith.constant 0 : i32
    return %arg0, %c0_i32 : i32, i32
  }
  func.func @transform_6(%arg0: i32) -> i32 {
    %c0_i32 = arith.constant 0 : i32
    %c0_i32_0 = arith.constant 0 : i32
    return %c0_i32 : i32
  }
}

</mosaic_0001>

<llo_original>
// kernel: _forward_impl.1
$region0: #{_forward_impl.1}
  #allocation0 [shape = 'u32[]', space=smem, size = 0x4, offset = 0x4, fixed_abs, tag = 'smem constant byte address 0x4 - core index']
  #allocation1 [shape = 'u32[144,128]{1,0:T(1,128)}', space=vmem, size = 0x12000, scoped, tag = 'internal scratch']
  #allocation2 [shape = 'f32[1,128]{1,0:T(1,128)}', space=vmem, size = 0x200, scoped, tag = 'scratch operand']
  #allocation3 [shape = 'f32[1,128]{1,0:T(1,128)}', space=vmem, size = 0x200, scoped, tag = 'scratch operand']
  %s0 = inlined_call_operand.vmem [shape: f32[4], index: 0, kind: input, shape index: {}]
  %s1 = inlined_call_operand.vmem [shape: f32[256,128], index: 1, kind: input, shape index: {}]
  %s2 = inlined_call_operand.vmem [shape: f32[392,128], index: 2, kind: input, shape index: {}]
  %s3 = inlined_call_operand.vmem [shape: f32[256,128], index: 3, kind: input, shape index: {}]
  %s4 = inlined_call_operand.hbm [shape: f32[256,128], index: 4, kind: output, shape index: {0}]
  %s5 = inlined_call_operand.hbm [shape: f32[256,128], index: 5, kind: output, shape index: {1}]
  %s6 = inlined_call_operand.vmem [shape: f32[3], index: 6, kind: output, shape index: {2}]
  %7 = xla_tuple %s4, %s5, %s6
  %s8 = sld [smem:[#allocation0]]
  $region77: #{_forward_impl.1} parent=0
    _
  %s10 = ssub.s32 1, %s8
  %s11 = scalar_select 0, %s10, %s8
  $region1: #{_forward_impl.1} parent=0
    #allocation4 [shape = 'u8[512]{0}', space=smem, size = 0x200, scoped, tag = 'input window, operand 0, single buffered']
    #allocation5 [shape = 's32[2]{0}', space=sflag, size = 0x8, scoped, tag = 'scoped memory for _forward_impl.1']
    #allocation6 [shape = 's32[2]{0}', space=sflag, size = 0x8, scoped, tag = 'scoped memory for _forward_impl.1']
    #allocation7 [shape = 's32[2]{0}', space=sflag, size = 0x8, scoped, tag = 'scoped memory for _forward_impl.1']
    #allocation8 [shape = 'u8[131072]{0}', space=vmem, size = 0x20000, scoped, tag = 'output window, operand 0']
    #allocation9 [shape = 'u8[131072]{0}', space=vmem, size = 0x20000, scoped, tag = 'output window, operand 1']
    #allocation10 [shape = 's32[2]{0}', space=sflag, size = 0x8, scoped, tag = 'scoped memory for _forward_impl.1']
    #allocation11 [shape = 'u8[512]{0}', space=smem, size = 0x200, scoped, tag = 'output window, operand 2, single buffered']
    %12 = vsyncpa [#allocation6], 0
    %13 = vsyncpa [#allocation5], 0
    %s14 = scalar_lea.sflag [#allocation5], 1
    %15 = vsyncpa %s14, 0
    %16 = vsyncpa [#allocation10], 0
    %s17 = scalar_lea.sflag [#allocation10], 1
    %18 = vsyncpa %s17, 0
    %19 = vsyncpa [#allocation7], 0
    loop: start=0, step=1, limit=4
    $region2: #{_forward_impl.1} parent=1 // loop_pre_header
      _
    $region3: #{_forward_impl.1} parent=1 // loop_header
      %s21 = sphi 0, %s25
      %p22 = scmp.ge.s32.totalorder %s21, 4
      %s29 = sphi 0, %s29
      %s31 = sphi 0, %s29
      %s32 = sphi 0, %s31
      %s46 = sphi 0, %s32
      %s52 = sphi 0, %s54
      %s55 = sphi 0, %s52
      %s56 = sphi 0, %s55
      %s72 = sphi 0, %s56
      %s76 = sphi 0, %s76
      %s78 = sphi 0, %s76
      %s79 = sphi 0, %s78
      %s93 = sphi 0, %s79
      %s99 = sphi 0, %s101
      %s102 = sphi 0, %s99
      %s103 = sphi 0, %s102
      %s119 = sphi 0, %s103
      %s125 = sphi 0, %s127
      %s128 = sphi 0, %s125
      %s129 = sphi 0, %s128
      %s145 = sphi 0, %s129
      %s151 = sphi 0, %s153
      %s154 = sphi 0, %s151
      %s155 = sphi 0, %s154
      %s171 = sphi 0, %s155
      %s175 = sphi 0, %s175
      %s177 = sphi 0, %s175
      %s178 = sphi 0, %s177
      %s192 = sphi 0, %s178
    $region4: #{_forward_impl.1} parent=1 // loop_header_branch
      %24 = sbr.rel (%p22) target = $region8
    $region5: #{_forward_impl.1} parent=1 // loop_body
      %s26 = ssub.s32 %s21, 1
      %s27 = ssub.s32 %s21, 2
      %s28 = sadd.s32 %s21, 1
      %s30 = sadd.s32 %s29, 1
      %p33 = scmp.eq.s32.totalorder %s21, 1
      %p34 = scmp.ne.s32.totalorder %s29, %s31
      %p35 = scmp.eq.s32.totalorder %s21, 0
      %p36 = por %p34, %p35
      %p37 = scmp.ne.s32.totalorder %s29, %s31
      %p38 = scmp.eq.s32.totalorder %s26, 1
      %p39 = por %p37, %p38
      %p40 = scmp.ne.s32.totalorder %s31, %s32
      %p41 = scmp.eq.s32.totalorder %s26, 0
      %p42 = por %p40, %p41
      %p43 = scmp.ne.s32.totalorder %s31, %s32
      %p44 = scmp.eq.s32.totalorder %s27, 1
      %p45 = por %p43, %p44
      %p47 = scmp.ne.s32.totalorder %s32, %s46
      %p48 = scmp.eq.s32.totalorder %s27, 0
      %p49 = por %p47, %p48
      %s50 = ssub.s32 %s21, %s28
      %p51 = scmp.eq.s32.totalorder %s50, 0
      %s53 = sadd.s32 %s52, 1
      %s54 = scalar_select %p51, %s52, %s53
      %p57 = pneg %p51
      %p58 = scmp.eq.s32.totalorder %s21, 1
      %p59 = por %p57, %p58
      %p60 = scmp.ne.s32.totalorder %s52, %s55
      %p61 = scmp.eq.s32.totalorder %s21, 0
      %p62 = por %p60, %p61
      %p63 = scmp.ne.s32.totalorder %s52, %s55
      %p64 = scmp.eq.s32.totalorder %s26, 1
      %p65 = por %p63, %p64
      %p66 = scmp.ne.s32.totalorder %s55, %s56
      %p67 = scmp.eq.s32.totalorder %s26, 0
      %p68 = por %p66, %p67
      %p69 = scmp.ne.s32.totalorder %s55, %s56
      %p70 = scmp.eq.s32.totalorder %s27, 1
      %p71 = por %p69, %p70
      %p73 = scmp.ne.s32.totalorder %s56, %s72
      %p74 = scmp.eq.s32.totalorder %s27, 0
      %p75 = por %p73, %p74
      %s77 = sadd.s32 %s76, 1
      %p80 = scmp.eq.s32.totalorder %s21, 1
      %p81 = scmp.ne.s32.totalorder %s76, %s78
      %p82 = scmp.eq.s32.totalorder %s21, 0
      %p83 = por %p81, %p82
      %p84 = scmp.ne.s32.totalorder %s76, %s78
      %p85 = scmp.eq.s32.totalorder %s26, 1
      %p86 = por %p84, %p85
      %p87 = scmp.ne.s32.totalorder %s78, %s79
      %p88 = scmp.eq.s32.totalorder %s26, 0
      %p89 = por %p87, %p88
      %p90 = scmp.ne.s32.totalorder %s78, %s79
      %p91 = scmp.eq.s32.totalorder %s27, 1
      %p92 = por %p90, %p91
      %p94 = scmp.ne.s32.totalorder %s79, %s93
      %p95 = scmp.eq.s32.totalorder %s27, 0
      %p96 = por %p94, %p95
      %s97 = ssub.s32 %s21, %s28
      %p98 = scmp.eq.s32.totalorder %s97, 0
      %s100 = sadd.s32 %s99, 1
      %s101 = scalar_select %p98, %s99, %s100
      %p104 = pneg %p98
      %p105 = scmp.eq.s32.totalorder %s21, 1
      %p106 = por %p104, %p105
      %p107 = scmp.ne.s32.totalorder %s99, %s102
      %p108 = scmp.eq.s32.totalorder %s21, 0
      %p109 = por %p107, %p108
      %p110 = scmp.ne.s32.totalorder %s99, %s102
      %p111 = scmp.eq.s32.totalorder %s26, 1
      %p112 = por %p110, %p111
      %p113 = scmp.ne.s32.totalorder %s102, %s103
      %p114 = scmp.eq.s32.totalorder %s26, 0
      %p115 = por %p113, %p114
      %p116 = scmp.ne.s32.totalorder %s102, %s103
      %p117 = scmp.eq.s32.totalorder %s27, 1
      %p118 = por %p116, %p117
      %p120 = scmp.ne.s32.totalorder %s103, %s119
      %p121 = scmp.eq.s32.totalorder %s27, 0
      %p122 = por %p120, %p121
      %s123 = ssub.s32 %s21, %s28
      %p124 = scmp.eq.s32.totalorder %s123, 0
      %s126 = sadd.s32 %s125, 1
      %s127 = scalar_select %p124, %s125, %s126
      %p130 = pneg %p124
      %p131 = scmp.eq.s32.totalorder %s21, 1
      %p132 = por %p130, %p131
      %p133 = scmp.ne.s32.totalorder %s125, %s128
      %p134 = scmp.eq.s32.totalorder %s21, 0
      %p135 = por %p133, %p134
      %p136 = scmp.ne.s32.totalorder %s125, %s128
      %p137 = scmp.eq.s32.totalorder %s26, 1
      %p138 = por %p136, %p137
      %p139 = scmp.ne.s32.totalorder %s128, %s129
      %p140 = scmp.eq.s32.totalorder %s26, 0
      %p141 = por %p139, %p140
      %p142 = scmp.ne.s32.totalorder %s128, %s129
      %p143 = scmp.eq.s32.totalorder %s27, 1
      %p144 = por %p142, %p143
      %p146 = scmp.ne.s32.totalorder %s129, %s145
      %p147 = scmp.eq.s32.totalorder %s27, 0
      %p148 = por %p146, %p147
      %s149 = ssub.s32 %s21, %s28
      %p150 = scmp.eq.s32.totalorder %s149, 0
      %s152 = sadd.s32 %s151, 1
      %s153 = scalar_select %p150, %s151, %s152
      %p156 = pneg %p150
      %p157 = scmp.eq.s32.totalorder %s21, 1
      %p158 = por %p156, %p157
      %p159 = scmp.ne.s32.totalorder %s151, %s154
      %p160 = scmp.eq.s32.totalorder %s21, 0
      %p161 = por %p159, %p160
      %p162 = scmp.ne.s32.totalorder %s151, %s154
      %p163 = scmp.eq.s32.totalorder %s26, 1
      %p164 = por %p162, %p163
      %p165 = scmp.ne.s32.totalorder %s154, %s155
      %p166 = scmp.eq.s32.totalorder %s26, 0
      %p167 = por %p165, %p166
      %p168 = scmp.ne.s32.totalorder %s154, %s155
      %p169 = scmp.eq.s32.totalorder %s27, 1
      %p170 = por %p168, %p169
      %p172 = scmp.ne.s32.totalorder %s155, %s171
      %p173 = scmp.eq.s32.totalorder %s27, 0
      %p174 = por %p172, %p173
      %s176 = sadd.s32 %s175, 1
      %p179 = scmp.eq.s32.totalorder %s21, 1
      %p180 = scmp.ne.s32.totalorder %s175, %s177
      %p181 = scmp.eq.s32.totalorder %s21, 0
      %p182 = por %p180, %p181
      %p183 = scmp.ne.s32.totalorder %s175, %s177
      %p184 = scmp.eq.s32.totalorder %s26, 1
      %p185 = por %p183, %p184
      %p186 = scmp.ne.s32.totalorder %s177, %s178
      %p187 = scmp.eq.s32.totalorder %s26, 0
      %p188 = por %p186, %p187
      %p189 = scmp.ne.s32.totalorder %s177, %s178
      %p190 = scmp.eq.s32.totalorder %s27, 1
      %p191 = por %p189, %p190
      %p193 = scmp.ne.s32.totalorder %s178, %s192
      %p194 = scmp.eq.s32.totalorder %s27, 0
      %p195 = por %p193, %p194
      %p196 = scmp.le.s32.totalorder 1, %s21
      %p197 = scmp.lt.s32.totalorder %s21, 3
      %p198 = pnand %p196, %p197
      %p199 = pneg %p198
      // Predicated region
      $region9: #{_forward_impl.1} parent=5 // pred_check
        _
      $region10: #{_forward_impl.1} parent=5 // pred_check_branch
        %201 = sbr.rel (%p198) target = $region12
      $region11: #{_forward_impl.1} parent=5 // pred_region
        %s202 = ssub.s32 %s21, 1
        // Predicated region
        $region13: #{_forward_impl.1} parent=11 // pred_check
          %p203 = pneg %p42
        $region14: #{_forward_impl.1} parent=11 // pred_check_branch
          %205 = sbr.rel (%p203) target = $region16
        $region15: #{_forward_impl.1} parent=11 // pred_region
          %s207 = ssub.s32 16, 16
          %208 = vsyncadd [#allocation6], %s207
          %s210 = sshll.u32 %s0, 4
          %s211 = int_to_ptr.vmem [resolvable:$true] %s210
          %213 = dma.vmem_to_smem %s211, 16, [#allocation4], [#allocation6]
        $region16: #{_forward_impl.1} parent=11 // pred_fallthru
          _
        // Predicated region
        $region17: #{_forward_impl.1} parent=11 // pred_check
          %p214 = pneg %p89
        $region18: #{_forward_impl.1} parent=11 // pred_check_branch
          %216 = sbr.rel (%p214) target = $region20
        $region19: #{_forward_impl.1} parent=11 // pred_region
          _
        $region20: #{_forward_impl.1} parent=11 // pred_fallthru
          _
      $region12: #{_forward_impl.1} parent=5 // pred_fallthru
        _
      %p217 = scmp.lt.s32.totalorder %s21, 2
      // Predicated region
      $region21: #{_forward_impl.1} parent=5 // pred_check
        %p218 = pneg %p217
      $region22: #{_forward_impl.1} parent=5 // pred_check_branch
        %220 = sbr.rel (%p218) target = $region24
      $region23: #{_forward_impl.1} parent=5 // pred_region
        // Predicated region
        $region25: #{_forward_impl.1} parent=23 // pred_check
          %p221 = pneg %p62
        $region26: #{_forward_impl.1} parent=23 // pred_check_branch
          %223 = sbr.rel (%p221) target = $region28
        $region27: #{_forward_impl.1} parent=23 // pred_region
          %s224 = smul.u32 16, %s21
          %p225 = scmp.lt.s32.totalorder %s224, 31
          %s226 = scalar_select %p225, %s224, 31
          %s227 = smul.addr %s226, 8
          %s228 = scalar_lea.vmem %s1, %s227
          %s229 = smul.u32 16, %s21
        $region28: #{_forward_impl.1} parent=23 // pred_fallthru
          _
        // Predicated region
        $region29: #{_forward_impl.1} parent=23 // pred_check
          %p230 = pneg %p109
        $region30: #{_forward_impl.1} parent=23 // pred_check_branch
          %232 = sbr.rel (%p230) target = $region32
        $region31: #{_forward_impl.1} parent=23 // pred_region
          %s233 = smul.u32 16, %s21
          %p234 = scmp.lt.s32.totalorder %s233, 31
          %s235 = scalar_select %p234, %s233, 31
          %s236 = smul.addr %s235, 8
          %s237 = scalar_lea.vmem %s3, %s236
          %s238 = smul.u32 16, %s21
        $region32: #{_forward_impl.1} parent=23 // pred_fallthru
          _
      $region24: #{_forward_impl.1} parent=5 // pred_fallthru
        _
      %p239 = scmp.le.s32.totalorder 1, %s21
      %p240 = scmp.lt.s32.totalorder %s21, 3
      %p241 = pnand %p239, %p240
      %p242 = pneg %p241
      // Predicated region
      $region33: #{_forward_impl.1} parent=5 // pred_check
        _
      $region34: #{_forward_impl.1} parent=5 // pred_check_branch
        %244 = sbr.rel (%p241) target = $region36
      $region35: #{_forward_impl.1} parent=5 // pred_region
        %s245 = ssub.s32 %s21, 1
        // Predicated region
        $region37: #{_forward_impl.1} parent=35 // pred_check
          %p246 = pneg %p42
        $region38: #{_forward_impl.1} parent=35 // pred_check_branch
          %248 = sbr.rel (%p246) target = $region40
        $region39: #{_forward_impl.1} parent=35 // pred_region
          %249 = dma.done [#allocation6], 16
        $region40: #{_forward_impl.1} parent=35 // pred_fallthru
          _
        %250 = sfence
        %p251 = pneg %p42
        %p252 = pneg %p39
        %s253 = smul.u32 16, %s26
        %p254 = scmp.lt.s32.totalorder %s253, 31
        %s255 = scalar_select %p254, %s253, 31
        %s256 = smul.addr %s255, 8
        %s257 = scalar_lea.vmem %s1, %s256
        %p258 = pneg %p68
        %p259 = pneg %p65
        %p260 = pneg %p89
        %p261 = pneg %p86
        %s262 = smul.u32 16, %s26
        %p263 = scmp.lt.s32.totalorder %s262, 31
        %s264 = scalar_select %p263, %s262, 31
        %s265 = smul.addr %s264, 8
        %s266 = scalar_lea.vmem %s3, %s265
        %p267 = pneg %p115
        %p268 = pneg %p112
        %p269 = pneg %p141
        %p270 = pneg %p138
        %s271 = sand.u32 %s128, 1
        %s272 = scalar_lea.sflag [#allocation5], %s271
        %s273 = sand.u32 %s128, 1
        %s274 = smul.addr %s273, 128
        %s275 = scalar_lea.vmem [#allocation8], %s274
        %p276 = pneg %p167
        %p277 = pneg %p164
        %s278 = sand.u32 %s154, 1
        %s279 = scalar_lea.sflag [#allocation10], %s278
        %s280 = sand.u32 %s154, 1
        %s281 = smul.addr %s280, 128
        %s282 = scalar_lea.vmem [#allocation9], %s281
        %p283 = pneg %p188
        %p284 = pneg %p185
        %s285 = smul.u32 16, %s26
        %p286 = scmp.lt.s32.totalorder %s285, 31
        %s287 = scalar_select %p286, %s285, 31
        %s288 = smul.addr %s287, 8
        %s289 = scalar_lea.vmem %s1, %s288
        %s290 = smul.u32 16, %s26
        %s291 = smul.u32 16, %s26
        %p292 = scmp.lt.s32.totalorder %s291, 31
        %s293 = scalar_select %p292, %s291, 31
        %s294 = smul.addr %s293, 8
        %s295 = scalar_lea.vmem %s3, %s294
        %s296 = smul.u32 16, %s26
        %s297 = smul.u32 16, %s26
        %s298 = smul.u32 16, %s26
        %p299 = scmp.eq.s32.totalorder %s26, 0
        // Predicated region
        $region41: #{_forward_impl.1} parent=35 // pred_check
          %p300 = pneg %p299
        $region42: #{_forward_impl.1} parent=35 // pred_check_branch
          %302 = sbr.rel (%p300) target = $region44
        $region43: #{_forward_impl.1} parent=35 // pred_region
          %303 = vst [vmem:[#allocation2] sm:$0x1] 0.0
          %304 = vst [vmem:[#allocation3] sm:$0x1] 0.0
        $region44: #{_forward_impl.1} parent=35 // pred_fallthru
          _
        %v305 = vld [vmem:[%s289] sm:$0xff]
        %v306 = vld [vmem:[%s289 + $0x8] sm:$0xff]
        %v307 = vld [vmem:[%s289 + $0x10] sm:$0xff]
        %v308 = vld [vmem:[%s289 + $0x18] sm:$0xff]
        %v309 = vld [vmem:[%s289 + $0x20] sm:$0xff]
        %v310 = vld [vmem:[%s289 + $0x28] sm:$0xff]
        %v311 = vld [vmem:[%s289 + $0x30] sm:$0xff]
        %v312 = vld [vmem:[%s289 + $0x38] sm:$0xff]
        %v313 = vld [vmem:[%s289 + $0x40] sm:$0xff]
        %v314 = vld [vmem:[%s289 + $0x48] sm:$0xff]
        %v315 = vld [vmem:[%s289 + $0x50] sm:$0xff]
        %v316 = vld [vmem:[%s289 + $0x58] sm:$0xff]
        %v317 = vld [vmem:[%s289 + $0x60] sm:$0xff]
        %v318 = vld [vmem:[%s289 + $0x68] sm:$0xff]
        %v319 = vld [vmem:[%s289 + $0x70] sm:$0xff]
        %v320 = vld [vmem:[%s289 + $0x78] sm:$0xff]
        %v321 = vld [vmem:[%s2] sm:$0xff]
        %v322 = vld [vmem:[%s2 + $0x8] sm:$0xff]
        %v323 = vld [vmem:[%s2 + $0x10] sm:$0xff]
        %v324 = vld [vmem:[%s2 + $0x18] sm:$0xff]
        %v325 = vld [vmem:[%s2 + $0x20] sm:$0xff]
        %v326 = vld [vmem:[%s2 + $0x28] sm:$0xff]
        %v327 = vld [vmem:[%s2 + $0x30] sm:$0xff]
        %v328 = vld [vmem:[%s2 + $0x38] sm:$0xff]
        %v329 = vld [vmem:[%s2 + $0x40] sm:$0xff]
        %v330 = vld [vmem:[%s2 + $0x48] sm:$0xff]
        %v331 = vld [vmem:[%s2 + $0x50] sm:$0xff]
        %v332 = vld [vmem:[%s2 + $0x58] sm:$0xff]
        %v333 = vld [vmem:[%s2 + $0x60] sm:$0xff]
        %v334 = vld [vmem:[%s2 + $0x68] sm:$0xff]
        %v335 = vld [vmem:[%s2 + $0x70] sm:$0xff]
        %v336 = vld [vmem:[%s2 + $0x78] sm:$0xff]
        %v337 = vld [vmem:[%s2 + $0x180] sm:$0x1]
        %v338 = vlaneseq
        %v339 = vshrl.u32 %v338, 7
        %v340 = vsub.s32 0, %v339
        %v341 = vrot.slane %v337, %v340
        %342 = vmatprep.subr.mxu0 0.0
        %343 = vmatpush1.msra.mxu0 %v321
        %344 = vmatprep.subr.mxu0 0.0
        %345 = vmatpush1.msra.mxu0 %v322
        %346 = vmatprep.subr.mxu0 0.0
        %347 = vmatpush1.msra.mxu0 %v323
        %348 = vmatprep.subr.mxu0 0.0
        %349 = vmatpush1.msra.mxu0 %v324
        %350 = vmatprep.subr.mxu0 0.0
        %351 = vmatpush1.msra.mxu0 %v325
        %352 = vmatprep.subr.mxu0 0.0
        %353 = vmatpush1.msra.mxu0 %v326
        %354 = vmatprep.subr.mxu0 0.0
        %355 = vmatpush1.msra.mxu0 %v327
        %356 = vmatprep.subr.mxu0 0.0
        %357 = vmatpush1.msra.mxu0 %v328
        %358 = vmatprep.subr.mxu0 0.0
        %359 = vmatpush1.msra.mxu0 %v329
        %360 = vmatprep.subr.mxu0 0.0
        %361 = vmatpush1.msra.mxu0 %v330
        %362 = vmatprep.subr.mxu0 0.0
        %363 = vmatpush1.msra.mxu0 %v331
        %364 = vmatprep.subr.mxu0 0.0
        %365 = vmatpush1.msra.mxu0 %v332
        %366 = vmatprep.subr.mxu0 0.0
        %367 = vmatpush1.msra.mxu0 %v333
        %368 = vmatprep.subr.mxu0 0.0
        %369 = vmatpush1.msra.mxu0 %v334
        %370 = vmatprep.subr.mxu0 0.0
        %371 = vmatpush1.msra.mxu0 %v335
        %372 = vmatprep.subr.mxu0 0.0
        %373 = vmatpush1.msra.mxu0 %v336
        %374 = vmatprep.subr.mxu0 0.0
        %375 = vmatpush1.msra.mxu0 0.0
        %376 = vmatprep.subr.mxu0 0.0
        %377 = vmatpush1.msra.mxu0 0.0
        %378 = vmatprep.subr.mxu0 0.0
        %379 = vmatpush1.msra.mxu0 0.0
        %380 = vmatprep.subr.mxu0 0.0
        %381 = vmatpush1.msra.mxu0 0.0
        %382 = vmatprep.subr.mxu0 0.0
        %383 = vmatpush1.msra.mxu0 0.0
        %384 = vmatprep.subr.mxu0 0.0
        %385 = vmatpush1.msra.mxu0 0.0
        %386 = vmatprep.subr.mxu0 0.0
        %387 = vmatpush1.msra.mxu0 0.0
        %388 = vmatprep.subr.mxu0 0.0
        %389 = vmatpush1.msra.mxu0 0.0
        %390 = vmatprep.subr.mxu0 0.0
        %391 = vmatpush1.msra.mxu0 0.0
        %392 = vmatprep.subr.mxu0 0.0
        %393 = vmatpush1.msra.mxu0 0.0
        %394 = vmatprep.subr.mxu0 0.0
        %395 = vmatpush1.msra.mxu0 0.0
        %396 = vmatprep.subr.mxu0 0.0
        %397 = vmatpush1.msra.mxu0 0.0
        %398 = vmatprep.subr.mxu0 0.0
        %399 = vmatpush1.msra.mxu0 0.0
        %400 = vmatprep.subr.mxu0 0.0
        %401 = vmatpush1.msra.mxu0 0.0
        %402 = vmatprep.subr.mxu0 0.0
        %403 = vmatpush1.msra.mxu0 0.0
        %404 = vmatprep.subr.mxu0 0.0
        %405 = vmatpush1.msra.mxu0 0.0
        %406 = vmatprep.mubr.f32.mxu0 0.0
        %407 = vmatmul.mubr.f32.gmra.mrb[0].mxu0 %v305
        %v408 = vpop.f32.mrb[0].mxu0
        %v409 = vadd.f32 %v341, %v408
        %v410 = vpop.f32.mrb[0].mxu0
        %411 = vmatprep.mubr.f32.mxu0 0.0
        %412 = vmatmul.mubr.f32.gmra.mrb[0].mxu0 %v306
        %v413 = vpop.f32.mrb[0].mxu0
        %v414 = vadd.f32 %v341, %v413
        %v415 = vpop.f32.mrb[0].mxu0
        %416 = vmatprep.mubr.f32.mxu0 0.0
        %417 = vmatmul.mubr.f32.gmra.mrb[0].mxu0 %v307
        %v418 = vpop.f32.mrb[0].mxu0
        %v419 = vadd.f32 %v341, %v418
        %v420 = vpop.f32.mrb[0].mxu0
        %421 = vmatprep.mubr.f32.mxu0 0.0
        %422 = vmatmul.mubr.f32.gmra.mrb[0].mxu0 %v308
        %v423 = vpop.f32.mrb[0].mxu0
        %v424 = vadd.f32 %v341, %v423
        %v425 = vpop.f32.mrb[0].mxu0
        %426 = vmatprep.mubr.f32.mxu0 0.0
        %427 = vmatmul.mubr.f32.gmra.mrb[0].mxu0 %v309
        %v428 = vpop.f32.mrb[0].mxu0
        %v429 = vadd.f32 %v341, %v428
        %v430 = vpop.f32.mrb[0].mxu0
        %431 = vmatprep.mubr.f32.mxu0 0.0
        %432 = vmatmul.mubr.f32.gmra.mrb[0].mxu0 %v310
        %v433 = vpop.f32.mrb[0].mxu0
        %v434 = vadd.f32 %v341, %v433
        %v435 = vpop.f32.mrb[0].mxu0
        %436 = vmatprep.mubr.f32.mxu0 0.0
        %437 = vmatmul.mubr.f32.gmra.mrb[0].mxu0 %v311
        %v438 = vpop.f32.mrb[0].mxu0
        %v439 = vadd.f32 %v341, %v438
        %v440 = vpop.f32.mrb[0].mxu0
        %441 = vmatprep.mubr.f32.mxu0 0.0
        %442 = vmatmul.mubr.f32.gmra.mrb[0].mxu0 %v312
        %v443 = vpop.f32.mrb[0].mxu0
        %v444 = vadd.f32 %v341, %v443
        %v445 = vpop.f32.mrb[0].mxu0
        %446 = vmatprep.mubr.f32.mxu0 0.0
        %447 = vmatmul.mubr.f32.gmra.mrb[0].mxu0 %v313
        %v448 = vpop.f32.mrb[0].mxu0
        %v449 = vadd.f32 %v341, %v448
        %v450 = vpop.f32.mrb[0].mxu0
        %451 = vmatprep.mubr.f32.mxu0 0.0
        %452 = vmatmul.mubr.f32.gmra.mrb[0].mxu0 %v314
        %v453 = vpop.f32.mrb[0].mxu0
        %v454 = vadd.f32 %v341, %v453
        %v455 = vpop.f32.mrb[0].mxu0
        %456 = vmatprep.mubr.f32.mxu0 0.0
        %457 = vmatmul.mubr.f32.gmra.mrb[0].mxu0 %v315
        %v458 = vpop.f32.mrb[0].mxu0
        %v459 = vadd.f32 %v341, %v458
        %v460 = vpop.f32.mrb[0].mxu0
        %461 = vmatprep.mubr.f32.mxu0 0.0
        %462 = vmatmul.mubr.f32.gmra.mrb[0].mxu0 %v316
        %v463 = vpop.f32.mrb[0].mxu0
        %v464 = vadd.f32 %v341, %v463
        %v465 = vpop.f32.mrb[0].mxu0
        %466 = vmatprep.mubr.f32.mxu0 0.0
        %467 = vmatmul.mubr.f32.gmra.mrb[0].mxu0 %v317
        %v468 = vpop.f32.mrb[0].mxu0
        %v469 = vadd.f32 %v341, %v468
        %v470 = vpop.f32.mrb[0].mxu0
        %471 = vmatprep.mubr.f32.mxu0 0.0
        %472 = vmatmul.mubr.f32.gmra.mrb[0].mxu0 %v318
        %v473 = vpop.f32.mrb[0].mxu0
        %v474 = vadd.f32 %v341, %v473
        %v475 = vpop.f32.mrb[0].mxu0
        %476 = vmatprep.mubr.f32.mxu0 0.0
        %477 = vmatmul.mubr.f32.gmra.mrb[0].mxu0 %v319
        %v478 = vpop.f32.mrb[0].mxu0
        %v479 = vadd.f32 %v341, %v478
        %v480 = vpop.f32.mrb[0].mxu0
        %481 = vmatprep.mubr.f32.mxu0 0.0
        %482 = vmatmul.mubr.f32.gmra.mrb[0].mxu0 %v320
        %v483 = vpop.f32.mrb[0].mxu0
        %v484 = vadd.f32 %v341, %v483
        %v485 = vpop.f32.mrb[0].mxu0
        %486 = vdwg.mxu0
        %v487 = vmax.f32 %v409, 0.0
        %v488 = vmax.f32 %v414, 0.0
        %v489 = vmax.f32 %v419, 0.0
        %v490 = vmax.f32 %v424, 0.0
        %v491 = vmax.f32 %v429, 0.0
        %v492 = vmax.f32 %v434, 0.0
        %v493 = vmax.f32 %v439, 0.0
        %v494 = vmax.f32 %v444, 0.0
        %v495 = vmax.f32 %v449, 0.0
        %v496 = vmax.f32 %v454, 0.0
        %v497 = vmax.f32 %v459, 0.0
        %v498 = vmax.f32 %v464, 0.0
        %v499 = vmax.f32 %v469, 0.0
        %v500 = vmax.f32 %v474, 0.0
        %v501 = vmax.f32 %v479, 0.0
        %v502 = vmax.f32 %v484, 0.0
        %v503 = vld [vmem:[%s2 + $0x80] sm:$0xff]
        %v504 = vld [vmem:[%s2 + $0x88] sm:$0xff]
        %v505 = vld [vmem:[%s2 + $0x90] sm:$0xff]
        %v506 = vld [vmem:[%s2 + $0x98] sm:$0xff]
        %v507 = vld [vmem:[%s2 + $0xa0] sm:$0xff]
        %v508 = vld [vmem:[%s2 + $0xa8] sm:$0xff]
        %v509 = vld [vmem:[%s2 + $0xb0] sm:$0xff]
        %v510 = vld [vmem:[%s2 + $0xb8] sm:$0xff]
        %v511 = vld [vmem:[%s2 + $0xc0] sm:$0xff]
        %v512 = vld [vmem:[%s2 + $0xc8] sm:$0xff]
        %v513 = vld [vmem:[%s2 + $0xd0] sm:$0xff]
        %v514 = vld [vmem:[%s2 + $0xd8] sm:$0xff]
        %v515 = vld [vmem:[%s2 + $0xe0] sm:$0xff]
        %v516 = vld [vmem:[%s2 + $0xe8] sm:$0xff]
        %v517 = vld [vmem:[%s2 + $0xf0] sm:$0xff]
        %v518 = vld [vmem:[%s2 + $0xf8] sm:$0xff]
        %v519 = vld [vmem:[%s2 + $0x181] sm:$0x1]
        %v520 = vlaneseq
        %v521 = vshrl.u32 %v520, 7
        %v522 = vsub.s32 0, %v521
        %v523 = vrot.slane %v519, %v522
        %524 = vmatprep.subr.mxu0 0.0
        %525 = vmatpush1.msra.mxu0 %v503
        %526 = vmatprep.subr.mxu0 0.0
        %527 = vmatpush1.msra.mxu0 %v504
        %528 = vmatprep.subr.mxu0 0.0
        %529 = vmatpush1.msra.mxu0 %v505
        %530 = vmatprep.subr.mxu0 0.0
        %531 = vmatpush1.msra.mxu0 %v506
        %532 = vmatprep.subr.mxu0 0.0
        %533 = vmatpush1.msra.mxu0 %v507
        %534 = vmatprep.subr.mxu0 0.0
        %535 = vmatpush1.msra.mxu0 %v508
        %536 = vmatprep.subr.mxu0 0.0
        %537 = vmatpush1.msra.mxu0 %v509
        %538 = vmatprep.subr.mxu0 0.0
        %539 = vmatpush1.msra.mxu0 %v510
        %540 = vmatprep.subr.mxu0 0.0
        %541 = vmatpush1.msra.mxu0 %v511
        %542 = vmatprep.subr.mxu0 0.0
        %543 = vmatpush1.msra.mxu0 %v512
        %544 = vmatprep.subr.mxu0 0.0
        %545 = vmatpush1.msra.mxu0 %v513
        %546 = vmatprep.subr.mxu0 0.0
        %547 = vmatpush1.msra.mxu0 %v514
        %548 = vmatprep.subr.mxu0 0.0
        %549 = vmatpush1.msra.mxu0 %v515
        %550 = vmatprep.subr.mxu0 0.0
        %551 = vmatpush1.msra.mxu0 %v516
        %552 = vmatprep.subr.mxu0 0.0
        %553 = vmatpush1.msra.mxu0 %v517
        %554 = vmatprep.subr.mxu0 0.0
        %555 = vmatpush1.msra.mxu0 %v518
        %556 = vmatprep.subr.mxu0 0.0
        %557 = vmatpush1.msra.mxu0 0.0
        %558 = vmatprep.subr.mxu0 0.0
        %559 = vmatpush1.msra.mxu0 0.0
        %560 = vmatprep.subr.mxu0 0.0
        %561 = vmatpush1.msra.mxu0 0.0
        %562 = vmatprep.subr.mxu0 0.0
        %563 = vmatpush1.msra.mxu0 0.0
        %564 = vmatprep.subr.mxu0 0.0
        %565 = vmatpush1.msra.mxu0 0.0
        %566 = vmatprep.subr.mxu0 0.0
        %567 = vmatpush1.msra.mxu0 0.0
        %568 = vmatprep.subr.mxu0 0.0
        %569 = vmatpush1.msra.mxu0 0.0
        %570 = vmatprep.subr.mxu0 0.0
        %571 = vmatpush1.msra.mxu0 0.0
        %572 = vmatprep.subr.mxu0 0.0
        %573 = vmatpush1.msra.mxu0 0.0
        %574 = vmatprep.subr.mxu0 0.0
        %575 = vmatpush1.msra.mxu0 0.0
        %576 = vmatprep.subr.mxu0 0.0
        %577 = vmatpush1.msra.mxu0 0.0
        %578 = vmatprep.subr.mxu0 0.0
        %579 = vmatpush1.msra.mxu0 0.0
        %580 = vmatprep.subr.mxu0 0.0
        %581 = vmatpush1.msra.mxu0 0.0
        %582 = vmatprep.subr.mxu0 0.0
        %583 = vmatpush1.msra.mxu0 0.0
        %584 = vmatprep.subr.mxu0 0.0
        %585 = vmatpush1.msra.mxu0 0.0
        %586 = vmatprep.subr.mxu0 0.0
        %587 = vmatpush1.msra.mxu0 0.0
        %588 = vmatprep.mubr.f32.mxu0 0.0
        %589 = vmatmul.mubr.f32.gmra.mrb[0].mxu0 %v487
        %v590 = vpop.f32.mrb[0].mxu0
        %v591 = vadd.f32 %v523, %v590
        %v592 = vpop.f32.mrb[0].mxu0
        %593 = vmatprep.mubr.f32.mxu0 0.0
        %594 = vmatmul.mubr.f32.gmra.mrb[0].mxu0 %v488
        %v595 = vpop.f32.mrb[0].mxu0
        %v596 = vadd.f32 %v523, %v595
        %v597 = vpop.f32.mrb[0].mxu0
        %598 = vmatprep.mubr.f32.mxu0 0.0
        %599 = vmatmul.mubr.f32.gmra.mrb[0].mxu0 %v489
        %v600 = vpop.f32.mrb[0].mxu0
        %v601 = vadd.f32 %v523, %v600
        %v602 = vpop.f32.mrb[0].mxu0
        %603 = vmatprep.mubr.f32.mxu0 0.0
        %604 = vmatmul.mubr.f32.gmra.mrb[0].mxu0 %v490
        %v605 = vpop.f32.mrb[0].mxu0
        %v606 = vadd.f32 %v523, %v605
        %v607 = vpop.f32.mrb[0].mxu0
        %608 = vmatprep.mubr.f32.mxu0 0.0
        %609 = vmatmul.mubr.f32.gmra.mrb[0].mxu0 %v491
        %v610 = vpop.f32.mrb[0].mxu0
        %v611 = vadd.f32 %v523, %v610
        %v612 = vpop.f32.mrb[0].mxu0
        %613 = vmatprep.mubr.f32.mxu0 0.0
        %614 = vmatmul.mubr.f32.gmra.mrb[0].mxu0 %v492
        %v615 = vpop.f32.mrb[0].mxu0
        %v616 = vadd.f32 %v523, %v615
        %v617 = vpop.f32.mrb[0].mxu0
        %618 = vmatprep.mubr.f32.mxu0 0.0
        %619 = vmatmul.mubr.f32.gmra.mrb[0].mxu0 %v493
        %v620 = vpop.f32.mrb[0].mxu0
        %v621 = vadd.f32 %v523, %v620
        %v622 = vpop.f32.mrb[0].mxu0
        %623 = vmatprep.mubr.f32.mxu0 0.0
        %624 = vmatmul.mubr.f32.gmra.mrb[0].mxu0 %v494
        %v625 = vpop.f32.mrb[0].mxu0
        %v626 = vadd.f32 %v523, %v625
        %v627 = vpop.f32.mrb[0].mxu0
        %628 = vmatprep.mubr.f32.mxu0 0.0
        %629 = vmatmul.mubr.f32.gmra.mrb[0].mxu0 %v495
        %v630 = vpop.f32.mrb[0].mxu0
        %v631 = vadd.f32 %v523, %v630
        %v632 = vpop.f32.mrb[0].mxu0
        %633 = vmatprep.mubr.f32.mxu0 0.0
        %634 = vmatmul.mubr.f32.gmra.mrb[0].mxu0 %v496
        %v635 = vpop.f32.mrb[0].mxu0
        %v636 = vadd.f32 %v523, %v635
        %v637 = vpop.f32.mrb[0].mxu0
        %638 = vmatprep.mubr.f32.mxu0 0.0
        %639 = vmatmul.mubr.f32.gmra.mrb[0].mxu0 %v497
        %v640 = vpop.f32.mrb[0].mxu0
        %v641 = vadd.f32 %v523, %v640
        %v642 = vpop.f32.mrb[0].mxu0
        %643 = vmatprep.mubr.f32.mxu0 0.0
        %644 = vmatmul.mubr.f32.gmra.mrb[0].mxu0 %v498
        %v645 = vpop.f32.mrb[0].mxu0
        %v646 = vadd.f32 %v523, %v645
        %v647 = vpop.f32.mrb[0].mxu0
        %648 = vmatprep.mubr.f32.mxu0 0.0
        %649 = vmatmul.mubr.f32.gmra.mrb[0].mxu0 %v499
        %v650 = vpop.f32.mrb[0].mxu0
        %v651 = vadd.f32 %v523, %v650
        %v652 = vpop.f32.mrb[0].mxu0
        %653 = vmatprep.mubr.f32.mxu0 0.0
        %654 = vmatmul.mubr.f32.gmra.mrb[0].mxu0 %v500
        %v655 = vpop.f32.mrb[0].mxu0
        %v656 = vadd.f32 %v523, %v655
        %v657 = vpop.f32.mrb[0].mxu0
        %658 = vmatprep.mubr.f32.mxu0 0.0
        %659 = vmatmul.mubr.f32.gmra.mrb[0].mxu0 %v501
        %v660 = vpop.f32.mrb[0].mxu0
        %v661 = vadd.f32 %v523, %v660
        %v662 = vpop.f32.mrb[0].mxu0
        %663 = vmatprep.mubr.f32.mxu0 0.0
        %664 = vmatmul.mubr.f32.gmra.mrb[0].mxu0 %v502
        %v665 = vpop.f32.mrb[0].mxu0
        %v666 = vadd.f32 %v523, %v665
        %v667 = vpop.f32.mrb[0].mxu0
        %668 = vdwg.mxu0
        %v669 = vld [vmem:[%s2 + $0x100] sm:$0xff]
        %v670 = vld [vmem:[%s2 + $0x108] sm:$0xff]
        %v671 = vld [vmem:[%s2 + $0x110] sm:$0xff]
        %v672 = vld [vmem:[%s2 + $0x118] sm:$0xff]
        %v673 = vld [vmem:[%s2 + $0x120] sm:$0xff]
        %v674 = vld [vmem:[%s2 + $0x128] sm:$0xff]
        %v675 = vld [vmem:[%s2 + $0x130] sm:$0xff]
        %v676 = vld [vmem:[%s2 + $0x138] sm:$0xff]
        %v677 = vld [vmem:[%s2 + $0x140] sm:$0xff]
        %v678 = vld [vmem:[%s2 + $0x148] sm:$0xff]
        %v679 = vld [vmem:[%s2 + $0x150] sm:$0xff]
        %v680 = vld [vmem:[%s2 + $0x158] sm:$0xff]
        %v681 = vld [vmem:[%s2 + $0x160] sm:$0xff]
        %v682 = vld [vmem:[%s2 + $0x168] sm:$0xff]
        %v683 = vld [vmem:[%s2 + $0x170] sm:$0xff]
        %v684 = vld [vmem:[%s2 + $0x178] sm:$0xff]
        %v685 = vld [vmem:[%s2 + $0x182] sm:$0x1]
        %v686 = vlaneseq
        %v687 = vshrl.u32 %v686, 7
        %v688 = vsub.s32 0, %v687
        %v689 = vrot.slane %v685, %v688
        %690 = vmatprep.subr.mxu0 0.0
        %691 = vmatpush1.msra.mxu0 %v669
        %692 = vmatprep.subr.mxu0 0.0
        %693 = vmatpush1.msra.mxu0 %v670
        %694 = vmatprep.subr.mxu0 0.0
        %695 = vmatpush1.msra.mxu0 %v671
        %696 = vmatprep.subr.mxu0 0.0
        %697 = vmatpush1.msra.mxu0 %v672
        %698 = vmatprep.subr.mxu0 0.0
        %699 = vmatpush1.msra.mxu0 %v673
        %700 = vmatprep.subr.mxu0 0.0
        %701 = vmatpush1.msra.mxu0 %v674
        %702 = vmatprep.subr.mxu0 0.0
        %703 = vmatpush1.msra.mxu0 %v675
        %704 = vmatprep.subr.mxu0 0.0
        %705 = vmatpush1.msra.mxu0 %v676
        %706 = vmatprep.subr.mxu0 0.0
        %707 = vmatpush1.msra.mxu0 %v677
        %708 = vmatprep.subr.mxu0 0.0
        %709 = vmatpush1.msra.mxu0 %v678
        %710 = vmatprep.subr.mxu0 0.0
        %711 = vmatpush1.msra.mxu0 %v679
        %712 = vmatprep.subr.mxu0 0.0
        %713 = vmatpush1.msra.mxu0 %v680
        %714 = vmatprep.subr.mxu0 0.0
        %715 = vmatpush1.msra.mxu0 %v681
        %716 = vmatprep.subr.mxu0 0.0
        %717 = vmatpush1.msra.mxu0 %v682
        %718 = vmatprep.subr.mxu0 0.0
        %719 = vmatpush1.msra.mxu0 %v683
        %720 = vmatprep.subr.mxu0 0.0
        %721 = vmatpush1.msra.mxu0 %v684
        %722 = vmatprep.subr.mxu0 0.0
        %723 = vmatpush1.msra.mxu0 0.0
        %724 = vmatprep.subr.mxu0 0.0
        %725 = vmatpush1.msra.mxu0 0.0
        %726 = vmatprep.subr.mxu0 0.0
        %727 = vmatpush1.msra.mxu0 0.0
        %728 = vmatprep.subr.mxu0 0.0
        %729 = vmatpush1.msra.mxu0 0.0
        %730 = vmatprep.subr.mxu0 0.0
        %731 = vmatpush1.msra.mxu0 0.0
        %732 = vmatprep.subr.mxu0 0.0
        %733 = vmatpush1.msra.mxu0 0.0
        %734 = vmatprep.subr.mxu0 0.0
        %735 = vmatpush1.msra.mxu0 0.0
        %736 = vmatprep.subr.mxu0 0.0
        %737 = vmatpush1.msra.mxu0 0.0
        %738 = vmatprep.subr.mxu0 0.0
        %739 = vmatpush1.msra.mxu0 0.0
        %740 = vmatprep.subr.mxu0 0.0
        %741 = vmatpush1.msra.mxu0 0.0
        %742 = vmatprep.subr.mxu0 0.0
        %743 = vmatpush1.msra.mxu0 0.0
        %744 = vmatprep.subr.mxu0 0.0
        %745 = vmatpush1.msra.mxu0 0.0
        %746 = vmatprep.subr.mxu0 0.0
        %747 = vmatpush1.msra.mxu0 0.0
        %748 = vmatprep.subr.mxu0 0.0
        %749 = vmatpush1.msra.mxu0 0.0
        %750 = vmatprep.subr.mxu0 0.0
        %751 = vmatpush1.msra.mxu0 0.0
        %752 = vmatprep.subr.mxu0 0.0
        %753 = vmatpush1.msra.mxu0 0.0
        %754 = vmatprep.mubr.f32.mxu0 0.0
        %755 = vmatmul.mubr.f32.gmra.mrb[0].mxu0 %v591
        %v756 = vpop.f32.mrb[0].mxu0
        %v757 = vadd.f32 %v689, %v756
        %v758 = vpop.f32.mrb[0].mxu0
        %759 = vmatprep.mubr.f32.mxu0 0.0
        %760 = vmatmul.mubr.f32.gmra.mrb[0].mxu0 %v596
        %v761 = vpop.f32.mrb[0].mxu0
        %v762 = vadd.f32 %v689, %v761
        %v763 = vpop.f32.mrb[0].mxu0
        %764 = vmatprep.mubr.f32.mxu0 0.0
        %765 = vmatmul.mubr.f32.gmra.mrb[0].mxu0 %v601
        %v766 = vpop.f32.mrb[0].mxu0
        %v767 = vadd.f32 %v689, %v766
        %v768 = vpop.f32.mrb[0].mxu0
        %769 = vmatprep.mubr.f32.mxu0 0.0
        %770 = vmatmul.mubr.f32.gmra.mrb[0].mxu0 %v606
        %v771 = vpop.f32.mrb[0].mxu0
        %v772 = vadd.f32 %v689, %v771
        %v773 = vpop.f32.mrb[0].mxu0
        %774 = vmatprep.mubr.f32.mxu0 0.0
        %775 = vmatmul.mubr.f32.gmra.mrb[0].mxu0 %v611
        %v776 = vpop.f32.mrb[0].mxu0
        %v777 = vadd.f32 %v689, %v776
        %v778 = vpop.f32.mrb[0].mxu0
        %779 = vmatprep.mubr.f32.mxu0 0.0
        %780 = vmatmul.mubr.f32.gmra.mrb[0].mxu0 %v616
        %v781 = vpop.f32.mrb[0].mxu0
        %v782 = vadd.f32 %v689, %v781
        %v783 = vpop.f32.mrb[0].mxu0
        %784 = vmatprep.mubr.f32.mxu0 0.0
        %785 = vmatmul.mubr.f32.gmra.mrb[0].mxu0 %v621
        %v786 = vpop.f32.mrb[0].mxu0
        %v787 = vadd.f32 %v689, %v786
        %v788 = vpop.f32.mrb[0].mxu0
        %789 = vmatprep.mubr.f32.mxu0 0.0
        %790 = vmatmul.mubr.f32.gmra.mrb[0].mxu0 %v626
        %v791 = vpop.f32.mrb[0].mxu0
        %v792 = vadd.f32 %v689, %v791
        %v793 = vpop.f32.mrb[0].mxu0
        %794 = vmatprep.mubr.f32.mxu0 0.0
        %795 = vmatmul.mubr.f32.gmra.mrb[0].mxu0 %v631
        %v796 = vpop.f32.mrb[0].mxu0
        %v797 = vadd.f32 %v689, %v796
        %v798 = vpop.f32.mrb[0].mxu0
        %799 = vmatprep.mubr.f32.mxu0 0.0
        %800 = vmatmul.mubr.f32.gmra.mrb[0].mxu0 %v636
        %v801 = vpop.f32.mrb[0].mxu0
        %v802 = vadd.f32 %v689, %v801
        %v803 = vpop.f32.mrb[0].mxu0
        %804 = vmatprep.mubr.f32.mxu0 0.0
        %805 = vmatmul.mubr.f32.gmra.mrb[0].mxu0 %v641
        %v806 = vpop.f32.mrb[0].mxu0
        %v807 = vadd.f32 %v689, %v806
        %v808 = vpop.f32.mrb[0].mxu0
        %809 = vmatprep.mubr.f32.mxu0 0.0
        %810 = vmatmul.mubr.f32.gmra.mrb[0].mxu0 %v646
        %v811 = vpop.f32.mrb[0].mxu0
        %v812 = vadd.f32 %v689, %v811
        %v813 = vpop.f32.mrb[0].mxu0
        %814 = vmatprep.mubr.f32.mxu0 0.0
        %815 = vmatmul.mubr.f32.gmra.mrb[0].mxu0 %v651
        %v816 = vpop.f32.mrb[0].mxu0
        %v817 = vadd.f32 %v689, %v816
        %v818 = vpop.f32.mrb[0].mxu0
        %819 = vmatprep.mubr.f32.mxu0 0.0
        %820 = vmatmul.mubr.f32.gmra.mrb[0].mxu0 %v656
        %v821 = vpop.f32.mrb[0].mxu0
        %v822 = vadd.f32 %v689, %v821
        %v823 = vpop.f32.mrb[0].mxu0
        %824 = vmatprep.mubr.f32.mxu0 0.0
        %825 = vmatmul.mubr.f32.gmra.mrb[0].mxu0 %v661
        %v826 = vpop.f32.mrb[0].mxu0
        %v827 = vadd.f32 %v689, %v826
        %v828 = vpop.f32.mrb[0].mxu0
        %829 = vmatprep.mubr.f32.mxu0 0.0
        %830 = vmatmul.mubr.f32.gmra.mrb[0].mxu0 %v666
        %v831 = vpop.f32.mrb[0].mxu0
        %v832 = vadd.f32 %v689, %v831
        %v833 = vpop.f32.mrb[0].mxu0
        %834 = vdwg.mxu0
        %v835 = vtanh.pop %v757
        %v836 = vtanh.pop %v762
        %v837 = vtanh.pop %v767
        %v838 = vtanh.pop %v772
        %v839 = vtanh.pop %v777
        %v840 = vtanh.pop %v782
        %v841 = vtanh.pop %v787
        %v842 = vtanh.pop %v792
        %v843 = vtanh.pop %v797
        %v844 = vtanh.pop %v802
        %v845 = vtanh.pop %v807
        %v846 = vtanh.pop %v812
        %v847 = vtanh.pop %v817
        %v848 = vtanh.pop %v822
        %v849 = vtanh.pop %v827
        %v850 = vtanh.pop %v832
        %851 = vst [vmem:[%s275] sm:$0xff] %v591
        %852 = vst [vmem:[%s275 + $0x8] sm:$0xff] %v596
        %853 = vst [vmem:[%s275 + $0x10] sm:$0xff] %v601
        %854 = vst [vmem:[%s275 + $0x18] sm:$0xff] %v606
        %855 = vst [vmem:[%s275 + $0x20] sm:$0xff] %v611
        %856 = vst [vmem:[%s275 + $0x28] sm:$0xff] %v616
        %857 = vst [vmem:[%s275 + $0x30] sm:$0xff] %v621
        %858 = vst [vmem:[%s275 + $0x38] sm:$0xff] %v626
        %859 = vst [vmem:[%s275 + $0x40] sm:$0xff] %v631
        %860 = vst [vmem:[%s275 + $0x48] sm:$0xff] %v636
        %861 = vst [vmem:[%s275 + $0x50] sm:$0xff] %v641
        %862 = vst [vmem:[%s275 + $0x58] sm:$0xff] %v646
        %863 = vst [vmem:[%s275 + $0x60] sm:$0xff] %v651
        %864 = vst [vmem:[%s275 + $0x68] sm:$0xff] %v656
        %865 = vst [vmem:[%s275 + $0x70] sm:$0xff] %v661
        %866 = vst [vmem:[%s275 + $0x78] sm:$0xff] %v666
        %867 = vst [vmem:[%s282] sm:$0xff] %v835
        %868 = vst [vmem:[%s282 + $0x8] sm:$0xff] %v836
        %869 = vst [vmem:[%s282 + $0x10] sm:$0xff] %v837
        %870 = vst [vmem:[%s282 + $0x18] sm:$0xff] %v838
        %871 = vst [vmem:[%s282 + $0x20] sm:$0xff] %v839
        %872 = vst [vmem:[%s282 + $0x28] sm:$0xff] %v840
        %873 = vst [vmem:[%s282 + $0x30] sm:$0xff] %v841
        %874 = vst [vmem:[%s282 + $0x38] sm:$0xff] %v842
        %875 = vst [vmem:[%s282 + $0x40] sm:$0xff] %v843
        %876 = vst [vmem:[%s282 + $0x48] sm:$0xff] %v844
        %877 = vst [vmem:[%s282 + $0x50] sm:$0xff] %v845
        %878 = vst [vmem:[%s282 + $0x58] sm:$0xff] %v846
        %879 = vst [vmem:[%s282 + $0x60] sm:$0xff] %v847
        %880 = vst [vmem:[%s282 + $0x68] sm:$0xff] %v848
        %881 = vst [vmem:[%s282 + $0x70] sm:$0xff] %v849
        %882 = vst [vmem:[%s282 + $0x78] sm:$0xff] %v850
        %v883 = vld [vmem:[%s295] sm:$0xff]
        %v884 = vld [vmem:[%s295 + $0x8] sm:$0xff]
        %v885 = vld [vmem:[%s295 + $0x10] sm:$0xff]
        %v886 = vld [vmem:[%s295 + $0x18] sm:$0xff]
        %v887 = vld [vmem:[%s295 + $0x20] sm:$0xff]
        %v888 = vld [vmem:[%s295 + $0x28] sm:$0xff]
        %v889 = vld [vmem:[%s295 + $0x30] sm:$0xff]
        %v890 = vld [vmem:[%s295 + $0x38] sm:$0xff]
        %v891 = vld [vmem:[%s295 + $0x40] sm:$0xff]
        %v892 = vld [vmem:[%s295 + $0x48] sm:$0xff]
        %v893 = vld [vmem:[%s295 + $0x50] sm:$0xff]
        %v894 = vld [vmem:[%s295 + $0x58] sm:$0xff]
        %v895 = vld [vmem:[%s295 + $0x60] sm:$0xff]
        %v896 = vld [vmem:[%s295 + $0x68] sm:$0xff]
        %v897 = vld [vmem:[%s295 + $0x70] sm:$0xff]
        %v898 = vld [vmem:[%s295 + $0x78] sm:$0xff]
        %v899 = vsub.f32 %v835, %v883
        %v900 = vsub.f32 %v836, %v884
        %v901 = vsub.f32 %v837, %v885
        %v902 = vsub.f32 %v838, %v886
        %v903 = vsub.f32 %v839, %v887
        %v904 = vsub.f32 %v840, %v888
        %v905 = vsub.f32 %v841, %v889
        %v906 = vsub.f32 %v842, %v890
        %v907 = vsub.f32 %v843, %v891
        %v908 = vsub.f32 %v844, %v892
        %v909 = vsub.f32 %v845, %v893
        %v910 = vsub.f32 %v846, %v894
        %v911 = vsub.f32 %v847, %v895
        %v912 = vsub.f32 %v848, %v896
        %v913 = vsub.f32 %v849, %v897
        %v914 = vsub.f32 %v850, %v898
        %s915 = sld [smem:[#allocation4 + $0x2]]
        %v916 = vstv %s915
        %v917 = vsub.f32 %v591, %v916
        %v918 = vsub.f32 %v596, %v916
        %v919 = vsub.f32 %v601, %v916
        %v920 = vsub.f32 %v606, %v916
        %v921 = vsub.f32 %v611, %v916
        %v922 = vsub.f32 %v616, %v916
        %v923 = vsub.f32 %v621, %v916
        %v924 = vsub.f32 %v626, %v916
        %v925 = vsub.f32 %v631, %v916
        %v926 = vsub.f32 %v636, %v916
        %v927 = vsub.f32 %v641, %v916
        %v928 = vsub.f32 %v646, %v916
        %v929 = vsub.f32 %v651, %v916
        %v930 = vsub.f32 %v656, %v916
        %v931 = vsub.f32 %v661, %v916
        %v932 = vsub.f32 %v666, %v916
        %v933 = vmax.f32 %v917, 0.0
        %v934 = vmax.f32 %v918, 0.0
        %v935 = vmax.f32 %v919, 0.0
        %v936 = vmax.f32 %v920, 0.0
        %v937 = vmax.f32 %v921, 0.0
        %v938 = vmax.f32 %v922, 0.0
        %v939 = vmax.f32 %v923, 0.0
        %v940 = vmax.f32 %v924, 0.0
        %v941 = vmax.f32 %v925, 0.0
        %v942 = vmax.f32 %v926, 0.0
        %v943 = vmax.f32 %v927, 0.0
        %v944 = vmax.f32 %v928, 0.0
        %v945 = vmax.f32 %v929, 0.0
        %v946 = vmax.f32 %v930, 0.0
        %v947 = vmax.f32 %v931, 0.0
        %v948 = vmax.f32 %v932, 0.0
        %v949 = vld [vmem:[#allocation2] sm:$0x1]
        %v950 = vmul.f32 %v899, %v899
        %v951 = vmul.f32 %v900, %v900
        %v952 = vmul.f32 %v901, %v901
        %v953 = vmul.f32 %v902, %v902
        %v954 = vmul.f32 %v903, %v903
        %v955 = vmul.f32 %v904, %v904
        %v956 = vmul.f32 %v905, %v905
        %v957 = vmul.f32 %v906, %v906
        %v958 = vmul.f32 %v907, %v907
        %v959 = vmul.f32 %v908, %v908
        %v960 = vmul.f32 %v909, %v909
        %v961 = vmul.f32 %v910, %v910
        %v962 = vmul.f32 %v911, %v911
        %v963 = vmul.f32 %v912, %v912
        %v964 = vmul.f32 %v913, %v913
        %v965 = vmul.f32 %v914, %v914
        %v966 = vadd.f32 %v950, %v951
        %v967 = vadd.f32 %v966, %v952
        %v968 = vadd.f32 %v967, %v953
        %v969 = vadd.f32 %v968, %v954
        %v970 = vadd.f32 %v969, %v955
        %v971 = vadd.f32 %v970, %v956
        %v972 = vadd.f32 %v971, %v957
        %v973 = vadd.f32 %v972, %v958
        %v974 = vadd.f32 %v973, %v959
        %v975 = vadd.f32 %v974, %v960
        %v976 = vadd.f32 %v975, %v961
        %v977 = vadd.f32 %v976, %v962
        %v978 = vadd.f32 %v977, %v963
        %v979 = vadd.f32 %v978, %v964
        %v980 = vadd.f32 %v979, %v965
        %v981 = vrot.slane %v980, 4
        %v982 = vadd.f32 %v980, %v981
        %v983 = vrot.slane %v982, 2
        %v984 = vadd.f32 %v982, %v983
        %v985 = vrot.slane %v984, 1
        %v986 = vadd.f32 %v984, %v985
        %v987 = vadd.f32 %v949, %v986
        %988 = vst [vmem:[#allocation2] sm:$0x1] %v987
        %v989 = vld [vmem:[#allocation3] sm:$0x1]
        %v990 = vmul.f32 %v933, %v933
        %v991 = vmul.f32 %v934, %v934
        %v992 = vmul.f32 %v935, %v935
        %v993 = vmul.f32 %v936, %v936
        %v994 = vmul.f32 %v937, %v937
        %v995 = vmul.f32 %v938, %v938
        %v996 = vmul.f32 %v939, %v939
        %v997 = vmul.f32 %v940, %v940
        %v998 = vmul.f32 %v941, %v941
        %v999 = vmul.f32 %v942, %v942
        %v1000 = vmul.f32 %v943, %v943
        %v1001 = vmul.f32 %v944, %v944
        %v1002 = vmul.f32 %v945, %v945
        %v1003 = vmul.f32 %v946, %v946
        %v1004 = vmul.f32 %v947, %v947
        %v1005 = vmul.f32 %v948, %v948
        %v1006 = vadd.f32 %v990, %v991
        %v1007 = vadd.f32 %v1006, %v992
        %v1008 = vadd.f32 %v1007, %v993
        %v1009 = vadd.f32 %v1008, %v994
        %v1010 = vadd.f32 %v1009, %v995
        %v1011 = vadd.f32 %v1010, %v996
        %v1012 = vadd.f32 %v1011, %v997
        %v1013 = vadd.f32 %v1012, %v998
        %v1014 = vadd.f32 %v1013, %v999
        %v1015 = vadd.f32 %v1014, %v1000
        %v1016 = vadd.f32 %v1015, %v1001
        %v1017 = vadd.f32 %v1016, %v1002
        %v1018 = vadd.f32 %v1017, %v1003
        %v1019 = vadd.f32 %v1018, %v1004
        %v1020 = vadd.f32 %v1019, %v1005
        %v1021 = vrot.slane %v1020, 4
        %v1022 = vadd.f32 %v1020, %v1021
        %v1023 = vrot.slane %v1022, 2
        %v1024 = vadd.f32 %v1022, %v1023
        %v1025 = vrot.slane %v1024, 1
        %v1026 = vadd.f32 %v1024, %v1025
        %v1027 = vadd.f32 %v989, %v1026
        %1028 = vst [vmem:[#allocation3] sm:$0x1] %v1027
        %p1029 = scmp.eq.s32.totalorder %s26, 1
        // Predicated region
        $region45: #{_forward_impl.1} parent=35 // pred_check
          %p1030 = pneg %p1029
        $region46: #{_forward_impl.1} parent=35 // pred_check_branch
          %1032 = sbr.rel (%p1030) target = $region48
        $region47: #{_forward_impl.1} parent=35 // pred_region
          %s1033 = sld [smem:[#allocation4 + $0x3]]
          %s1034 = sld [smem:[#allocation4]]
          %v1035 = vld [vmem:[#allocation2] sm:$0x1]
          %vm1036 = vcmask 1040384
          %v1037 = vsel %vm1036, %v1035, 0.0
          %1038 = vadd.xlane.f32.xlu0 %v1037
          %v1039 = vpop.xlane.xlu0 %1038
          %v1040 = vrot.slane %v1039, 4
          %v1041 = vadd.f32 %v1039, %v1040
          %v1042 = vrot.slane %v1041, 2
          %v1043 = vadd.f32 %v1041, %v1042
          %v1044 = vrot.slane %v1043, 1
          %v1045 = vadd.f32 %v1043, %v1044
          %s1046 = vtos %v1045
          %s1047 = smul.f32 %s1034, %s1046
          %s1048 = smul.f32 %s1047, %s1033
          %s1049 = sld [smem:[#allocation4 + $0x1]]
          %v1050 = vld [vmem:[#allocation3] sm:$0x1]
          %v1051 = vsel %vm1036, %v1050, 0.0
          %1052 = vadd.xlane.f32.xlu0 %v1051
          %v1053 = vpop.xlane.xlu0 %1052
          %v1054 = vrot.slane %v1053, 4
          %v1055 = vadd.f32 %v1053, %v1054
          %v1056 = vrot.slane %v1055, 2
          %v1057 = vadd.f32 %v1055, %v1056
          %v1058 = vrot.slane %v1057, 1
          %v1059 = vadd.f32 %v1057, %v1058
          %s1060 = vtos %v1059
          %s1061 = smul.f32 %s1049, %s1060
          %s1062 = smul.f32 %s1061, %s1033
          %s1063 = scalar_lea.smem [#allocation11], 0
          %1064 = sst [smem:[%s1063]] %s1048
          %s1065 = scalar_lea.smem [#allocation11], 1
          %1066 = sst [smem:[%s1065]] %s1062
          %s1067 = sadd.f32 %s1048, %s1062
          %s1068 = scalar_lea.smem [#allocation11], 2
          %1069 = sst [smem:[%s1068]] %s1067
        $region48: #{_forward_impl.1} parent=35 // pred_fallthru
          _
        %s1070 = sand.u32 %s128, 1
        %s1071 = scalar_lea.sflag [#allocation5], %s1070
        %s1072 = sand.u32 %s128, 1
        %s1073 = smul.addr %s1072, 128
        %s1074 = scalar_lea.vmem [#allocation8], %s1073
        %s1075 = sand.u32 %s154, 1
        %s1076 = scalar_lea.sflag [#allocation10], %s1075
        %s1077 = sand.u32 %s154, 1
        %s1078 = smul.addr %s1077, 128
        %s1079 = scalar_lea.vmem [#allocation9], %s1078
        // Predicated region
        $region49: #{_forward_impl.1} parent=35 // pred_check
          %p1080 = pneg %p138
        $region50: #{_forward_impl.1} parent=35 // pred_check_branch
          %1082 = sbr.rel (%p1080) target = $region52
        $region51: #{_forward_impl.1} parent=35 // pred_region
          %s1083 = smul.u32 16, %s26
          %s1085 = ssub.s32 2048, 2048
          %1086 = vsyncadd %s1071, %s1085
          %s1087 = smul.addr %s1083, 128
          %s1088 = scalar_lea.hbm %s4, %s1087
          %s1089 = sshll.u32 %s1074, 4
          %s1090 = int_to_ptr.vmem [resolvable:$true] %s1089
          %1095 = dma.vmem_to_hbm [thread:$0]  %s1090, 2048, %s1088, %s1071, 128, 128, 8
        $region52: #{_forward_impl.1} parent=35 // pred_fallthru
          _
        // Predicated region
        $region53: #{_forward_impl.1} parent=35 // pred_check
          %p1096 = pneg %p164
        $region54: #{_forward_impl.1} parent=35 // pred_check_branch
          %1098 = sbr.rel (%p1096) target = $region56
        $region55: #{_forward_impl.1} parent=35 // pred_region
          %s1099 = smul.u32 16, %s26
          %s1101 = ssub.s32 2048, 2048
          %1102 = vsyncadd %s1076, %s1101
          %s1103 = smul.addr %s1099, 128
          %s1104 = scalar_lea.hbm %s5, %s1103
          %s1105 = sshll.u32 %s1079, 4
          %s1106 = int_to_ptr.vmem [resolvable:$true] %s1105
          %1111 = dma.vmem_to_hbm [thread:$0]  %s1106, 2048, %s1104, %s1076, 128, 128, 8
        $region56: #{_forward_impl.1} parent=35 // pred_fallthru
          _
        // Predicated region
        $region57: #{_forward_impl.1} parent=35 // pred_check
          %p1112 = pneg %p185
        $region58: #{_forward_impl.1} parent=35 // pred_check_branch
          %1114 = sbr.rel (%p1112) target = $region60
        $region59: #{_forward_impl.1} parent=35 // pred_region
          %s1116 = ssub.s32 16, 16
          %1117 = vsyncadd [#allocation7], %s1116
          %s1119 = sshll.u32 %s6, 4
          %s1120 = int_to_ptr.vmem [resolvable:$true] %s1119
          %1122 = dma.smem_to_vmem [#allocation11], 16, %s1120, [#allocation7]
        $region60: #{_forward_impl.1} parent=35 // pred_fallthru
          _
        // Predicated region
        $region61: #{_forward_impl.1} parent=35 // pred_check
          %p1123 = pneg %p185
        $region62: #{_forward_impl.1} parent=35 // pred_check_branch
          %1125 = sbr.rel (%p1123) target = $region64
        $region63: #{_forward_impl.1} parent=35 // pred_region
          %1126 = dma.done [#allocation7], 16
        $region64: #{_forward_impl.1} parent=35 // pred_fallthru
          _
        %1127 = sfence
      $region36: #{_forward_impl.1} parent=5 // pred_fallthru
        _
      %p1128 = scmp.le.s32.totalorder 2, %s21
      // Predicated region
      $region65: #{_forward_impl.1} parent=5 // pred_check
        %p1129 = pneg %p1128
      $region66: #{_forward_impl.1} parent=5 // pred_check_branch
        %1131 = sbr.rel (%p1129) target = $region68
      $region67: #{_forward_impl.1} parent=5 // pred_region
        %s1132 = ssub.s32 %s21, 2
        // Predicated region
        $region69: #{_forward_impl.1} parent=67 // pred_check
          %p1133 = pneg %p144
        $region70: #{_forward_impl.1} parent=67 // pred_check_branch
          %1135 = sbr.rel (%p1133) target = $region72
        $region71: #{_forward_impl.1} parent=67 // pred_region
          %s1136 = sand.u32 %s129, 1
          %s1137 = scalar_lea.sflag [#allocation5], %s1136
          %s1138 = sand.u32 %s129, 1
          %s1139 = smul.addr %s1138, 128
          %s1140 = scalar_lea.vmem [#allocation8], %s1139
          %1141 = dma.done %s1137, 2048
        $region72: #{_forward_impl.1} parent=67 // pred_fallthru
          _
        // Predicated region
        $region73: #{_forward_impl.1} parent=67 // pred_check
          %p1142 = pneg %p170
        $region74: #{_forward_impl.1} parent=67 // pred_check_branch
          %1144 = sbr.rel (%p1142) target = $region76
        $region75: #{_forward_impl.1} parent=67 // pred_region
          %s1145 = sand.u32 %s155, 1
          %s1146 = scalar_lea.sflag [#allocation10], %s1145
          %s1147 = sand.u32 %s155, 1
          %s1148 = smul.addr %s1147, 128
          %s1149 = scalar_lea.vmem [#allocation9], %s1148
          %1150 = dma.done %s1146, 2048
        $region76: #{_forward_impl.1} parent=67 // pred_fallthru
          _
      $region68: #{_forward_impl.1} parent=5 // pred_fallthru
        _
    $region6: #{_forward_impl.1} parent=1 // loop_footer
      %s25 = sadd.s32 1, %s21
    $region7: #{_forward_impl.1} parent=1 // loop_footer_branch
      %20 = sbr.rel target = $region3
    $region8: #{_forward_impl.1} parent=1 // loop_exit
      _
    %1151 = vsyncpa [#allocation5], 1
    %s1152 = scalar_lea.sflag [#allocation5], 1
    %1153 = vsyncpa %s1152, 1
    %1154 = vsyncpa [#allocation10], 1
    %s1155 = scalar_lea.sflag [#allocation10], 1
    %1156 = vsyncpa %s1155, 1
    %1157 = vsyncpa [#allocation6], 1
    %s1158 = scalar_lea.sflag [#allocation6], 1
    %1159 = vsyncpa %s1158, 1
    %1160 = vsyncpa [#allocation7], 1
    %s1161 = scalar_lea.sflag [#allocation7], 1
    %1162 = vsyncpa %s1161, 1

</llo_original>
